<compile_context>
chip_gen: v7x
topology: tpu7x:2x2x1
jax: 0.10.0
libtpu: 0.0.40
codegen_flags: <defaults>
</compile_context>

<pallas_src>
import jax
import jax.numpy as jnp
from jax import lax
from jax.experimental import pallas as pl
from jax.experimental.pallas import tpu as pltpu


# ----------------------------------------------------------------------------
# Pallas kernel 1: hoisted input projection (both directions, whole sequence).
# ----------------------------------------------------------------------------
def proj_kernel(x_ref, w_ref, b_ref, o_ref):
    o_ref[...] = (jnp.dot(x_ref[...], w_ref[...],
                          preferred_element_type=jnp.float32)
                  + b_ref[...]).astype(o_ref.dtype)


def project_pallas(x2d, w, b):
    """(M, K) @ (K, N) + (1, N) -> (M, N), single full-block call.

    # TODO(synk): tile over M (256-wide on v6e/v7x, 128 on v5e) for large S*B.
    """
    M, K = x2d.shape
    N = w.shape[1]
    return pl.pallas_call(
        proj_kernel,
        out_shape=jax.ShapeDtypeStruct((M, N), jnp.float32),
        grid_spec=pltpu.PrefetchScalarGridSpec(
            num_scalar_prefetch=0,
            grid=(1,),
            in_specs=[pl.BlockSpec((M, K), lambda i: (0, 0)),
                      pl.BlockSpec((K, N), lambda i: (0, 0)),
                      pl.BlockSpec((1, N), lambda i: (0, 0))],
            out_specs=pl.BlockSpec((M, N), lambda i: (0, 0))),
        compiler_params=pltpu.CompilerParams(
            dimension_semantics=("arbitrary",)),
    )(x2d, w, b)


# ----------------------------------------------------------------------------
# Pallas kernel 2: fused bidirectional GRU recurrence for one layer.
#   Inputs are per-gate pre-activations gi_* = x @ W_i* + b_i* (+ b_h* for r,z)
#   of shape (S, B, H); recurrent weights per gate (3, H, H); bh_n (1, H).
#   Output: (S, B, 2H) with forward in [..., :H], backward in [..., H:2H].
# ----------------------------------------------------------------------------
def bidir_gru_kernel(gir_f_ref, giz_f_ref, gin_f_ref,
                     gir_b_ref, giz_b_ref, gin_b_ref,
                     wh_f_ref, wh_b_ref, bhn_f_ref, bhn_b_ref,
                     out_ref):
    S, B, H2 = out_ref.shape
    H = H2 // 2

    # Hoist weight / bias loads out of the time loop.
    whr_f, whz_f, whn_f = wh_f_ref[0], wh_f_ref[1], wh_f_ref[2]
    whr_b, whz_b, whn_b = wh_b_ref[0], wh_b_ref[1], wh_b_ref[2]
    bhn_f = bhn_f_ref[...]
    bhn_b = bhn_b_ref[...]

    def gru_step(h_prev, g_r, g_z, g_n, whr, whz, whn, bhn):
        r = jax.nn.sigmoid(
            g_r + jnp.dot(h_prev, whr, preferred_element_type=jnp.float32))
        z = jax.nn.sigmoid(
            g_z + jnp.dot(h_prev, whz, preferred_element_type=jnp.float32))
        n = jnp.tanh(
            g_n + r * (jnp.dot(h_prev, whn,
                               preferred_element_type=jnp.float32) + bhn))
        return (1.0 - z) * n + z * h_prev

    def body(t, carry):
        h_f, h_b = carry
        tb = S - 1 - t  # backward direction: reversed time, no jnp.flip copies
        h_f = gru_step(h_f,
                       gir_f_ref[t], giz_f_ref[t], gin_f_ref[t],
                       whr_f, whz_f, whn_f, bhn_f)
        h_b = gru_step(h_b,
                       gir_b_ref[tb], giz_b_ref[tb], gin_b_ref[tb],
                       whr_b, whz_b, whn_b, bhn_b)
        out_ref[pl.ds(t, 1), :, 0:H] = h_f[None].astype(out_ref.dtype)
        out_ref[pl.ds(tb, 1), :, H:2 * H] = h_b[None].astype(out_ref.dtype)
        return h_f, h_b

    h0 = jnp.zeros((B, H), jnp.float32)
    lax.fori_loop(0, S, body, (h0, h0))


def bidir_gru_recurrence_pallas(gir_f, giz_f, gin_f, gir_b, giz_b, gin_b,
                                wh_f, wh_b, bhn_f, bhn_b):
    S, B, H = gir_f.shape
    gi_spec = pl.BlockSpec((S, B, H), lambda i: (0, 0, 0))
    wh_spec = pl.BlockSpec((3, H, H), lambda i: (0, 0, 0))
    b_spec = pl.BlockSpec((1, H), lambda i: (0, 0))
    return pl.pallas_call(
        bidir_gru_kernel,
        out_shape=jax.ShapeDtypeStruct((S, B, 2 * H), jnp.float32),
        grid_spec=pltpu.PrefetchScalarGridSpec(
            num_scalar_prefetch=0,
            grid=(1,),
            in_specs=[gi_spec] * 6 + [wh_spec] * 2 + [b_spec] * 2,
            out_specs=pl.BlockSpec((S, B, 2 * H), lambda i: (0, 0, 0))),
        compiler_params=pltpu.CompilerParams(
            dimension_semantics=("arbitrary",)),  # recurrent -> sequential
    )(gir_f, giz_f, gin_f, gir_b, giz_b, gin_b, wh_f, wh_b, bhn_f, bhn_b)


# ----------------------------------------------------------------------------
# Full EncoderRNN forward (Pallas path).
# ----------------------------------------------------------------------------
def encoder_rnn_forward_pallas(x, params, num_layers, hidden_size):
    """Returns (outputs, hidden_t) with PyTorch EncoderRNN semantics.

    outputs : (S, B, 2*H)
    hidden_t: (num_layers, B, 2*H) == cat([h_n[0::2], h_n[1::2]], dim=2)
    """
    S, B, _ = x.shape
    H = hidden_size

    layer_in = x  # Dropout on the input: eval mode -> identity.
    finals_f, finals_b = [], []

    for l in range(num_layers):
        pf, pb = params[(l, 0)], params[(l, 1)]
        Din = layer_in.shape[-1]

        # Hoisted input projection for BOTH directions in one matmul.
        w_cat = jnp.concatenate([pf["wi"], pb["wi"]], axis=1)   # (Din, 6H)
        b_cat = jnp.concatenate([pf["bi"], pb["bi"]], axis=1)   # (1, 6H)
        gi = project_pallas(layer_in.reshape(S * B, Din), w_cat, b_cat)
        gi = gi.reshape(S, B, 6 * H)

        # Per-gate / per-direction splits; pre-fold bh_r, bh_z (constant adds)
        # so only bh_n remains on the serial per-step critical path.
        gir_f = gi[..., 0 * H:1 * H] + pf["bh"][:, 0:H]
        giz_f = gi[..., 1 * H:2 * H] + pf["bh"][:, H:2 * H]
        gin_f = gi[..., 2 * H:3 * H]
        gir_b = gi[..., 3 * H:4 * H] + pb["bh"][:, 0:H]
        giz_b = gi[..., 4 * H:5 * H] + pb["bh"][:, H:2 * H]
        gin_b = gi[..., 5 * H:6 * H]

        wh_f = pf["wh"].reshape(H, 3, H).transpose(1, 0, 2)   # (3, H, H)
        wh_b = pb["wh"].reshape(H, 3, H).transpose(1, 0, 2)   # (3, H, H)
        bhn_f = pf["bh"][:, 2 * H:3 * H]                      # (1, H)
        bhn_b = pb["bh"][:, 2 * H:3 * H]

        out_l = bidir_gru_recurrence_pallas(gir_f, giz_f, gin_f,
                                            gir_b, giz_b, gin_b,
                                            wh_f, wh_b, bhn_f, bhn_b)

        # Final hidden states come straight from the output (no extra outputs).
        finals_f.append(out_l[S - 1, :, 0:H])     # forward: last timestep
        finals_b.append(out_l[0, :, H:2 * H])     # backward: original t = 0
        layer_in = out_l

    outputs = layer_in
    hidden_t = jnp.concatenate([jnp.stack(finals_f, axis=0),
                                jnp.stack(finals_b, axis=0)], axis=2)
    return outputs, hidden_t


# ----------------------------------------------------------------------------
# Pure-JAX reference (mirrors PyTorch nn.GRU bidirectional forward).
# ----------------------------------------------------------------------------
def encoder_rnn_forward_ref(x, params, num_layers, hidden_size):
    S, B, _ = x.shape
    H = hidden_size
    layer_in = x
    finals = []
    for l in range(num_layers):
        dir_outs = []
        for d in range(2):
            p = params[(l, d)]
            xin = layer_in if d == 0 else jnp.flip(layer_in, axis=0)

            def step(h_prev, x_t, p=p):
                gi = x_t.astype(jnp.float32) @ p["wi"] + p["bi"][0]
                gh = h_prev @ p["wh"] + p["bh"][0]
                r = jax.nn.sigmoid(gi[:, 0:H] + gh[:, 0:H])
                z = jax.nn.sigmoid(gi[:, H:2 * H] + gh[:, H:2 * H])
                n = jnp.tanh(gi[:, 2 * H:3 * H] + r * gh[:, 2 * H:3 * H])
                h_new = (1.0 - z) * n + z * h_prev
                return h_new, h_new

            hlast, out = lax.scan(step, jnp.zeros((B, H), jnp.float32), xin)
            if d == 1:
                out = jnp.flip(out, axis=0)
            dir_outs.append(out)
            finals.append(hlast)
        layer_in = jnp.concatenate(dir_outs, axis=-1)
    h_n = jnp.stack(finals, axis=0)
    hidden_t = jnp.concatenate([h_n[0::2], h_n[1::2]], axis=2)
    return layer_in, hidden_t


# ----------------------------------------------------------------------------
# Deterministic parameter init (same shapes / init range as nn.GRU).
# ----------------------------------------------------------------------------
def init_gru_params(key, input_size, hidden_size, num_layers):
    params = {}
    k = 1.0 / jnp.sqrt(hidden_size)
    for l in range(num_layers):
        in_dim = input_size if l == 0 else 2 * hidden_size
        for d in range(2):
            key, k1, k2, k3, k4 = jax.random.split(key, 5)
            params[(l, d)] = {
                # stored transposed vs PyTorch: (in_dim, 3H), (H, 3H)
                "wi": jax.random.uniform(k1, (in_dim, 3 * hidden_size),
                                         jnp.float32, -k, k),
                "wh": jax.random.uniform(k2, (hidden_size, 3 * hidden_size),
                                         jnp.float32, -k, k),
                "bi": jax.random.uniform(k3, (1, 3 * hidden_size),
                                         jnp.float32, -k, k),
                "bh": jax.random.uniform(k4, (1, 3 * hidden_size),
                                         jnp.float32, -k, k),
            }
    return params


if __name__ == "__main__":
    S, B = 8, 4          # seq_len, batch
    INPUT_SIZE = 16
    HIDDEN = 32
    NUM_LAYERS = 2

    key = jax.random.PRNGKey(0)
    key, kx = jax.random.split(key)
    x = jax.random.normal(kx, (S, B, INPUT_SIZE), jnp.float32)
    params = init_gru_params(key, INPUT_SIZE, HIDDEN, NUM_LAYERS)

    fwd = jax.jit(lambda xx: encoder_rnn_forward_pallas(
        xx, params, NUM_LAYERS, HIDDEN))
    outputs, hidden_t = fwd(x)
    jax.block_until_ready((outputs, hidden_t))

    # Sanity-check against pure-JAX reference.
    ref_out, ref_hid = encoder_rnn_forward_ref(x, params, NUM_LAYERS, HIDDEN)
    assert outputs.shape == (S, B, 2 * HIDDEN)
    assert hidden_t.shape == (NUM_LAYERS, B, 2 * HIDDEN)
    assert jnp.allclose(outputs, ref_out, atol=1e-4, rtol=1e-4), \
        float(jnp.max(jnp.abs(outputs - ref_out)))
    assert jnp.allclose(hidden_t, ref_hid, atol=1e-4, rtol=1e-4), \
        float(jnp.max(jnp.abs(hidden_t - ref_hid)))

    print("KERNEL_OK")
</pallas_src>

<mosaic_0001>
module attributes {stable_mosaic.version = 11 : i64} {
  func.func @proj_kernel(%arg0: i32, %arg1: memref<32x16xf32, #tpu.memory_space<vmem>>, %arg2: memref<16x192xf32, #tpu.memory_space<vmem>>, %arg3: memref<1x192xf32, #tpu.memory_space<vmem>>, %arg4: memref<32x192xf32, #tpu.memory_space<vmem>>) attributes {dimension_semantics = [#tpu.dimension_semantics<arbitrary>], iteration_bounds = array<i64: 1>, scalar_prefetch = 0 : i64, scratch_operands = 0 : i64, tpu.core_type = #tpu.core_type<tc>, window_params = [{pipeline_mode = #tpu.pipeline_mode<synchronous>, transform_indices = @transform_0, window_bounds = array<i64: 32, 16>}, {pipeline_mode = #tpu.pipeline_mode<synchronous>, transform_indices = @transform_1, window_bounds = array<i64: 16, 192>}, {pipeline_mode = #tpu.pipeline_mode<synchronous>, transform_indices = @transform_2, window_bounds = array<i64: 1, 192>}, {pipeline_mode = #tpu.pipeline_mode<synchronous>, transform_indices = @transform_3, window_bounds = array<i64: 32, 192>}]} {
    %c0 = arith.constant 0 : index
    %c0_0 = arith.constant 0 : index
    %0 = vector.load %arg1[%c0, %c0_0] : memref<32x16xf32, #tpu.memory_space<vmem>>, vector<32x16xf32>
    %c0_1 = arith.constant 0 : index
    %c0_2 = arith.constant 0 : index
    %1 = vector.load %arg2[%c0_1, %c0_2] : memref<16x192xf32, #tpu.memory_space<vmem>>, vector<16x192xf32>
    %cst = arith.constant dense<0.000000e+00> : vector<32x192xf32>
    %2 = tpu.matmul %0, %1, %cst {dimension_numbers = #tpu.dot_dimension_numbers<[1], [0], [0], [1], [0, 0, 1, 1], [], []>} : vector<32x16xf32>, vector<16x192xf32>, vector<32x192xf32> -> vector<32x192xf32>
    %c0_3 = arith.constant 0 : index
    %c0_4 = arith.constant 0 : index
    %3 = vector.load %arg3[%c0_3, %c0_4] : memref<1x192xf32, #tpu.memory_space<vmem>>, vector<1x192xf32>
    %4 = vector.broadcast %3 : vector<1x192xf32> to vector<32x192xf32>
    %5 = arith.addf %2, %4 : vector<32x192xf32>
    %c0_5 = arith.constant 0 : index
    %c0_6 = arith.constant 0 : index
    %6 = vector.load %arg4[%c0_5, %c0_6] : memref<32x192xf32, #tpu.memory_space<vmem>>, vector<32x192xf32>
    tpu.vector_store %arg4[%c0_5, %c0_6], %5 {strides = array<i32>} : memref<32x192xf32, #tpu.memory_space<vmem>>, vector<32x192xf32>,
    return
  }
  func.func @transform_0(%arg0: i32) -> (i32, i32) {
    %c0_i32 = arith.constant 0 : i32
    %c0_i32_0 = arith.constant 0 : i32
    %c0_i32_1 = arith.constant 0 : i32
    return %c0_i32, %c0_i32_0 : i32, i32
  }
  func.func @transform_1(%arg0: i32) -> (i32, i32) {
    %c0_i32 = arith.constant 0 : i32
    %c0_i32_0 = arith.constant 0 : i32
    %c0_i32_1 = arith.constant 0 : i32
    return %c0_i32, %c0_i32_0 : i32, i32
  }
  func.func @transform_2(%arg0: i32) -> (i32, i32) {
    %c0_i32 = arith.constant 0 : i32
    %c0_i32_0 = arith.constant 0 : i32
    %c0_i32_1 = arith.constant 0 : i32
    return %c0_i32, %c0_i32_0 : i32, i32
  }
  func.func @transform_3(%arg0: i32) -> (i32, i32) {
    %c0_i32 = arith.constant 0 : i32
    %c0_i32_0 = arith.constant 0 : i32
    %c0_i32_1 = arith.constant 0 : i32
    return %c0_i32, %c0_i32_0 : i32, i32
  }
}

module attributes {stable_mosaic.version = 11 : i64} {
  func.func @bidir_gru_kernel(%arg0: i32, %arg1: memref<8x4x32xf32, #tpu.memory_space<vmem>>, %arg2: memref<8x4x32xf32, #tpu.memory_space<vmem>>, %arg3: memref<8x4x32xf32, #tpu.memory_space<vmem>>, %arg4: memref<8x4x32xf32, #tpu.memory_space<vmem>>, %arg5: memref<8x4x32xf32, #tpu.memory_space<vmem>>, %arg6: memref<8x4x32xf32, #tpu.memory_space<vmem>>, %arg7: memref<3x32x32xf32, #tpu.memory_space<vmem>>, %arg8: memref<3x32x32xf32, #tpu.memory_space<vmem>>, %arg9: memref<1x32xf32, #tpu.memory_space<vmem>>, %arg10: memref<1x32xf32, #tpu.memory_space<vmem>>, %arg11: memref<8x4x64xf32, #tpu.memory_space<vmem>>) attributes {dimension_semantics = [#tpu.dimension_semantics<arbitrary>], iteration_bounds = array<i64: 1>, scalar_prefetch = 0 : i64, scratch_operands = 0 : i64, tpu.core_type = #tpu.core_type<tc>, window_params = [{pipeline_mode = #tpu.pipeline_mode<synchronous>, transform_indices = @transform_0, window_bounds = array<i64: 8, 4, 32>}, {pipeline_mode = #tpu.pipeline_mode<synchronous>, transform_indices = @transform_1, window_bounds = array<i64: 8, 4, 32>}, {pipeline_mode = #tpu.pipeline_mode<synchronous>, transform_indices = @transform_2, window_bounds = array<i64: 8, 4, 32>}, {pipeline_mode = #tpu.pipeline_mode<synchronous>, transform_indices = @transform_3, window_bounds = array<i64: 8, 4, 32>}, {pipeline_mode = #tpu.pipeline_mode<synchronous>, transform_indices = @transform_4, window_bounds = array<i64: 8, 4, 32>}, {pipeline_mode = #tpu.pipeline_mode<synchronous>, transform_indices = @transform_5, window_bounds = array<i64: 8, 4, 32>}, {pipeline_mode = #tpu.pipeline_mode<synchronous>, transform_indices = @transform_6, window_bounds = array<i64: 3, 32, 32>}, {pipeline_mode = #tpu.pipeline_mode<synchronous>, transform_indices = @transform_7, window_bounds = array<i64: 3, 32, 32>}, {pipeline_mode = #tpu.pipeline_mode<synchronous>, transform_indices = @transform_8, window_bounds = array<i64: 1, 32>}, {pipeline_mode = #tpu.pipeline_mode<synchronous>, transform_indices = @transform_9, window_bounds = array<i64: 1, 32>}, {pipeline_mode = #tpu.pipeline_mode<synchronous>, transform_indices = @transform_10, window_bounds = array<i64: 8, 4, 64>}]} {
    %c0 = arith.constant 0 : index
    %c0_0 = arith.constant 0 : index
    %c0_1 = arith.constant 0 : index
    %0 = vector.load %arg7[%c0, %c0_0, %c0_1] : memref<3x32x32xf32, #tpu.memory_space<vmem>>, vector<1x32x32xf32>
    %1 = vector.shape_cast %0 : vector<1x32x32xf32> to vector<32x32xf32>
    %c1 = arith.constant 1 : index
    %c0_2 = arith.constant 0 : index
    %c0_3 = arith.constant 0 : index
    %2 = vector.load %arg7[%c1, %c0_2, %c0_3] : memref<3x32x32xf32, #tpu.memory_space<vmem>>, vector<1x32x32xf32>
    %3 = vector.shape_cast %2 : vector<1x32x32xf32> to vector<32x32xf32>
    %c2 = arith.constant 2 : index
    %c0_4 = arith.constant 0 : index
    %c0_5 = arith.constant 0 : index
    %4 = vector.load %arg7[%c2, %c0_4, %c0_5] : memref<3x32x32xf32, #tpu.memory_space<vmem>>, vector<1x32x32xf32>
    %5 = vector.shape_cast %4 : vector<1x32x32xf32> to vector<32x32xf32>
    %c0_6 = arith.constant 0 : index
    %c0_7 = arith.constant 0 : index
    %c0_8 = arith.constant 0 : index
    %6 = vector.load %arg8[%c0_6, %c0_7, %c0_8] : memref<3x32x32xf32, #tpu.memory_space<vmem>>, vector<1x32x32xf32>
    %7 = vector.shape_cast %6 : vector<1x32x32xf32> to vector<32x32xf32>
    %c1_9 = arith.constant 1 : index
    %c0_10 = arith.constant 0 : index
    %c0_11 = arith.constant 0 : index
    %8 = vector.load %arg8[%c1_9, %c0_10, %c0_11] : memref<3x32x32xf32, #tpu.memory_space<vmem>>, vector<1x32x32xf32>
    %9 = vector.shape_cast %8 : vector<1x32x32xf32> to vector<32x32xf32>
    %c2_12 = arith.constant 2 : index
    %c0_13 = arith.constant 0 : index
    %c0_14 = arith.constant 0 : index
    %10 = vector.load %arg8[%c2_12, %c0_13, %c0_14] : memref<3x32x32xf32, #tpu.memory_space<vmem>>, vector<1x32x32xf32>
    %11 = vector.shape_cast %10 : vector<1x32x32xf32> to vector<32x32xf32>
    %c0_15 = arith.constant 0 : index
    %c0_16 = arith.constant 0 : index
    %12 = vector.load %arg9[%c0_15, %c0_16] : memref<1x32xf32, #tpu.memory_space<vmem>>, vector<1x32xf32>
    %c0_17 = arith.constant 0 : index
    %c0_18 = arith.constant 0 : index
    %13 = vector.load %arg10[%c0_17, %c0_18] : memref<1x32xf32, #tpu.memory_space<vmem>>, vector<1x32xf32>
    %cst = arith.constant 0.000000e+00 : f32
    %14 = vector.broadcast %cst : f32 to vector<4x32xf32>
    %c0_i32 = arith.constant 0 : i32
    %c8_i32 = arith.constant 8 : i32
    %15 = arith.addi %c0_i32, %c8_i32 : i32
    %c1_i32 = arith.constant 1 : i32
    %16:2 = scf.for %arg12 = %c0_i32 to %15 step %c1_i32 iter_args(%arg13 = %14, %arg14 = %14) -> (vector<4x32xf32>, vector<4x32xf32>)  : i32 {
      %c7_i32 = arith.constant 7 : i32
      %17 = arith.subi %c7_i32, %arg12 : i32
      %18 = arith.index_cast %arg12 : i32 to index
      %c0_20 = arith.constant 0 : index
      %c0_21 = arith.constant 0 : index
      %19 = vector.load %arg1[%18, %c0_20, %c0_21] : memref<8x4x32xf32, #tpu.memory_space<vmem>>, vector<1x4x32xf32>
      %20 = vector.shape_cast %19 : vector<1x4x32xf32> to vector<4x32xf32>
      %21 = arith.index_cast %arg12 : i32 to index
      %c0_22 = arith.constant 0 : index
      %c0_23 = arith.constant 0 : index
      %22 = vector.load %arg2[%21, %c0_22, %c0_23] : memref<8x4x32xf32, #tpu.memory_space<vmem>>, vector<1x4x32xf32>
      %23 = vector.shape_cast %22 : vector<1x4x32xf32> to vector<4x32xf32>
      %24 = arith.index_cast %arg12 : i32 to index
      %c0_24 = arith.constant 0 : index
      %c0_25 = arith.constant 0 : index
      %25 = vector.load %arg3[%24, %c0_24, %c0_25] : memref<8x4x32xf32, #tpu.memory_space<vmem>>, vector<1x4x32xf32>
      %26 = vector.shape_cast %25 : vector<1x4x32xf32> to vector<4x32xf32>
      %cst_26 = arith.constant dense<0.000000e+00> : vector<4x32xf32>
      %27 = tpu.matmul %arg13, %1, %cst_26 {dimension_numbers = #tpu.dot_dimension_numbers<[1], [0], [0], [1], [0, 0, 1, 1], [], []>} : vector<4x32xf32>, vector<32x32xf32>, vector<4x32xf32> -> vector<4x32xf32>
      %28 = arith.addf %20, %27 : vector<4x32xf32>
      %29 = arith.negf %28 : vector<4x32xf32>
      %30 = math.exp %29 : vector<4x32xf32>
      %cst_27 = arith.constant 1.000000e+00 : f32
      %31 = vector.broadcast %cst_27 : f32 to vector<4x32xf32>
      %32 = arith.addf %31, %30 : vector<4x32xf32>
      %33 = arith.divf %31, %32 : vector<4x32xf32>
      %cst_28 = arith.constant dense<0.000000e+00> : vector<4x32xf32>
      %34 = tpu.matmul %arg13, %3, %cst_28 {dimension_numbers = #tpu.dot_dimension_numbers<[1], [0], [0], [1], [0, 0, 1, 1], [], []>} : vector<4x32xf32>, vector<32x32xf32>, vector<4x32xf32> -> vector<4x32xf32>
      %35 = arith.addf %23, %34 : vector<4x32xf32>
      %36 = arith.negf %35 : vector<4x32xf32>
      %37 = math.exp %36 : vector<4x32xf32>
      %cst_29 = arith.constant 1.000000e+00 : f32
      %38 = vector.broadcast %cst_29 : f32 to vector<4x32xf32>
      %39 = arith.addf %38, %37 : vector<4x32xf32>
      %40 = arith.divf %38, %39 : vector<4x32xf32>
      %cst_30 = arith.constant dense<0.000000e+00> : vector<4x32xf32>
      %41 = tpu.matmul %arg13, %5, %cst_30 {dimension_numbers = #tpu.dot_dimension_numbers<[1], [0], [0], [1], [0, 0, 1, 1], [], []>} : vector<4x32xf32>, vector<32x32xf32>, vector<4x32xf32> -> vector<4x32xf32>
      %42 = vector.broadcast %12 : vector<1x32xf32> to vector<4x32xf32>
      %43 = arith.addf %41, %42 : vector<4x32xf32>
      %44 = arith.mulf %33, %43 : vector<4x32xf32>
      %45 = arith.addf %26, %44 : vector<4x32xf32>
      %46 = math.tanh %45 : vector<4x32xf32>
      %cst_31 = arith.constant 1.000000e+00 : f32
      %47 = vector.broadcast %cst_31 : f32 to vector<4x32xf32>
      %48 = arith.subf %47, %40 : vector<4x32xf32>
      %49 = arith.mulf %48, %46 : vector<4x32xf32>
      %50 = arith.mulf %40, %arg13 : vector<4x32xf32>
      %51 = arith.addf %49, %50 : vector<4x32xf32>
      %52 = arith.index_cast %17 : i32 to index
      %c0_32 = arith.constant 0 : index
      %c0_33 = arith.constant 0 : index
      %53 = vector.load %arg4[%52, %c0_32, %c0_33] : memref<8x4x32xf32, #tpu.memory_space<vmem>>, vector<1x4x32xf32>
      %54 = vector.shape_cast %53 : vector<1x4x32xf32> to vector<4x32xf32>
      %55 = arith.index_cast %17 : i32 to index
      %c0_34 = arith.constant 0 : index
      %c0_35 = arith.constant 0 : index
      %56 = vector.load %arg5[%55, %c0_34, %c0_35] : memref<8x4x32xf32, #tpu.memory_space<vmem>>, vector<1x4x32xf32>
      %57 = vector.shape_cast %56 : vector<1x4x32xf32> to vector<4x32xf32>
      %58 = arith.index_cast %17 : i32 to index
      %c0_36 = arith.constant 0 : index
      %c0_37 = arith.constant 0 : index
      %59 = vector.load %arg6[%58, %c0_36, %c0_37] : memref<8x4x32xf32, #tpu.memory_space<vmem>>, vector<1x4x32xf32>
      %60 = vector.shape_cast %59 : vector<1x4x32xf32> to vector<4x32xf32>
      %cst_38 = arith.constant dense<0.000000e+00> : vector<4x32xf32>
      %61 = tpu.matmul %arg14, %7, %cst_38 {dimension_numbers = #tpu.dot_dimension_numbers<[1], [0], [0], [1], [0, 0, 1, 1], [], []>} : vector<4x32xf32>, vector<32x32xf32>, vector<4x32xf32> -> vector<4x32xf32>
      %62 = arith.addf %54, %61 : vector<4x32xf32>
      %63 = arith.negf %62 : vector<4x32xf32>
      %64 = math.exp %63 : vector<4x32xf32>
      %cst_39 = arith.constant 1.000000e+00 : f32
      %65 = vector.broadcast %cst_39 : f32 to vector<4x32xf32>
      %66 = arith.addf %65, %64 : vector<4x32xf32>
      %67 = arith.divf %65, %66 : vector<4x32xf32>
      %cst_40 = arith.constant dense<0.000000e+00> : vector<4x32xf32>
      %68 = tpu.matmul %arg14, %9, %cst_40 {dimension_numbers = #tpu.dot_dimension_numbers<[1], [0], [0], [1], [0, 0, 1, 1], [], []>} : vector<4x32xf32>, vector<32x32xf32>, vector<4x32xf32> -> vector<4x32xf32>
      %69 = arith.addf %57, %68 : vector<4x32xf32>
      %70 = arith.negf %69 : vector<4x32xf32>
      %71 = math.exp %70 : vector<4x32xf32>
      %cst_41 = arith.constant 1.000000e+00 : f32
      %72 = vector.broadcast %cst_41 : f32 to vector<4x32xf32>
      %73 = arith.addf %72, %71 : vector<4x32xf32>
      %74 = arith.divf %72, %73 : vector<4x32xf32>
      %cst_42 = arith.constant dense<0.000000e+00> : vector<4x32xf32>
      %75 = tpu.matmul %arg14, %11, %cst_42 {dimension_numbers = #tpu.dot_dimension_numbers<[1], [0], [0], [1], [0, 0, 1, 1], [], []>} : vector<4x32xf32>, vector<32x32xf32>, vector<4x32xf32> -> vector<4x32xf32>
      %76 = vector.broadcast %13 : vector<1x32xf32> to vector<4x32xf32>
      %77 = arith.addf %75, %76 : vector<4x32xf32>
      %78 = arith.mulf %67, %77 : vector<4x32xf32>
      %79 = arith.addf %60, %78 : vector<4x32xf32>
      %80 = math.tanh %79 : vector<4x32xf32>
      %cst_43 = arith.constant 1.000000e+00 : f32
      %81 = vector.broadcast %cst_43 : f32 to vector<4x32xf32>
      %82 = arith.subf %81, %74 : vector<4x32xf32>
      %83 = arith.mulf %82, %80 : vector<4x32xf32>
      %84 = arith.mulf %74, %arg14 : vector<4x32xf32>
      %85 = arith.addf %83, %84 : vector<4x32xf32>
      %86 = vector.shape_cast %51 : vector<4x32xf32> to vector<1x4x32xf32>
      %87 = arith.index_cast %arg12 : i32 to index
      %c0_44 = arith.constant 0 : index
      %c0_45 = arith.constant 0 : index
      %88 = vector.load %arg11[%87, %c0_44, %c0_45] : memref<8x4x64xf32, #tpu.memory_space<vmem>>, vector<1x4x32xf32>
      tpu.vector_store %arg11[%87, %c0_44, %c0_45], %86 {strides = array<i32>} : memref<8x4x64xf32, #tpu.memory_space<vmem>>, vector<1x4x32xf32>,
      %89 = vector.shape_cast %85 : vector<4x32xf32> to vector<1x4x32xf32>
      %90 = arith.index_cast %17 : i32 to index
      %c0_46 = arith.constant 0 : index
      %c32 = arith.constant 32 : index
      %91 = vector.load %arg11[%90, %c0_46, %c32] : memref<8x4x64xf32, #tpu.memory_space<vmem>>, vector<1x4x32xf32>
      tpu.vector_store %arg11[%90, %c0_46, %c32], %89 {strides = array<i32>} : memref<8x4x64xf32, #tpu.memory_space<vmem>>, vector<1x4x32xf32>,
      scf.yield %51, %85 : vector<4x32xf32>, vector<4x32xf32>
    }
    %c8_i32_19 = arith.constant 8 : i32
    return
  }
  func.func @transform_0(%arg0: i32) -> (i32, i32, i32) {
    %c0_i32 = arith.constant 0 : i32
    %c0_i32_0 = arith.constant 0 : i32
    %c0_i32_1 = arith.constant 0 : i32
    %c0_i32_2 = arith.constant 0 : i32
    return %c0_i32, %c0_i32_0, %c0_i32_1 : i32, i32, i32
  }
  func.func @transform_1(%arg0: i32) -> (i32, i32, i32) {
    %c0_i32 = arith.constant 0 : i32
    %c0_i32_0 = arith.constant 0 : i32
    %c0_i32_1 = arith.constant 0 : i32
    %c0_i32_2 = arith.constant 0 : i32
    return %c0_i32, %c0_i32_0, %c0_i32_1 : i32, i32, i32
  }
  func.func @transform_2(%arg0: i32) -> (i32, i32, i32) {
    %c0_i32 = arith.constant 0 : i32
    %c0_i32_0 = arith.constant 0 : i32
    %c0_i32_1 = arith.constant 0 : i32
    %c0_i32_2 = arith.constant 0 : i32
    return %c0_i32, %c0_i32_0, %c0_i32_1 : i32, i32, i32
  }
  func.func @transform_3(%arg0: i32) -> (i32, i32, i32) {
    %c0_i32 = arith.constant 0 : i32
    %c0_i32_0 = arith.constant 0 : i32
    %c0_i32_1 = arith.constant 0 : i32
    %c0_i32_2 = arith.constant 0 : i32
    return %c0_i32, %c0_i32_0, %c0_i32_1 : i32, i32, i32
  }
  func.func @transform_4(%arg0: i32) -> (i32, i32, i32) {
    %c0_i32 = arith.constant 0 : i32
    %c0_i32_0 = arith.constant 0 : i32
    %c0_i32_1 = arith.constant 0 : i32
    %c0_i32_2 = arith.constant 0 : i32
    return %c0_i32, %c0_i32_0, %c0_i32_1 : i32, i32, i32
  }
  func.func @transform_5(%arg0: i32) -> (i32, i32, i32) {
    %c0_i32 = arith.constant 0 : i32
    %c0_i32_0 = arith.constant 0 : i32
    %c0_i32_1 = arith.constant 0 : i32
    %c0_i32_2 = arith.constant 0 : i32
    return %c0_i32, %c0_i32_0, %c0_i32_1 : i32, i32, i32
  }
  func.func @transform_6(%arg0: i32) -> (i32, i32, i32) {
    %c0_i32 = arith.constant 0 : i32
    %c0_i32_0 = arith.constant 0 : i32
    %c0_i32_1 = arith.constant 0 : i32
    %c0_i32_2 = arith.constant 0 : i32
    return %c0_i32, %c0_i32_0, %c0_i32_1 : i32, i32, i32
  }
  func.func @transform_7(%arg0: i32) -> (i32, i32, i32) {
    %c0_i32 = arith.constant 0 : i32
    %c0_i32_0 = arith.constant 0 : i32
    %c0_i32_1 = arith.constant 0 : i32
    %c0_i32_2 = arith.constant 0 : i32
    return %c0_i32, %c0_i32_0, %c0_i32_1 : i32, i32, i32
  }
  func.func @transform_8(%arg0: i32) -> (i32, i32) {
    %c0_i32 = arith.constant 0 : i32
    %c0_i32_0 = arith.constant 0 : i32
    %c0_i32_1 = arith.constant 0 : i32
    return %c0_i32, %c0_i32_0 : i32, i32
  }
  func.func @transform_9(%arg0: i32) -> (i32, i32) {
    %c0_i32 = arith.constant 0 : i32
    %c0_i32_0 = arith.constant 0 : i32
    %c0_i32_1 = arith.constant 0 : i32
    return %c0_i32, %c0_i32_0 : i32, i32
  }
  func.func @transform_10(%arg0: i32) -> (i32, i32, i32) {
    %c0_i32 = arith.constant 0 : i32
    %c0_i32_0 = arith.constant 0 : i32
    %c0_i32_1 = arith.constant 0 : i32
    %c0_i32_2 = arith.constant 0 : i32
    return %c0_i32, %c0_i32_0, %c0_i32_1 : i32, i32, i32
  }
}

module attributes {stable_mosaic.version = 11 : i64} {
  func.func @proj_kernel(%arg0: i32, %arg1: memref<32x64xf32, #tpu.memory_space<vmem>>, %arg2: memref<64x192xf32, #tpu.memory_space<vmem>>, %arg3: memref<1x192xf32, #tpu.memory_space<vmem>>, %arg4: memref<32x192xf32, #tpu.memory_space<vmem>>) attributes {dimension_semantics = [#tpu.dimension_semantics<arbitrary>], iteration_bounds = array<i64: 1>, scalar_prefetch = 0 : i64, scratch_operands = 0 : i64, tpu.core_type = #tpu.core_type<tc>, window_params = [{pipeline_mode = #tpu.pipeline_mode<synchronous>, transform_indices = @transform_0, window_bounds = array<i64: 32, 64>}, {pipeline_mode = #tpu.pipeline_mode<synchronous>, transform_indices = @transform_1, window_bounds = array<i64: 64, 192>}, {pipeline_mode = #tpu.pipeline_mode<synchronous>, transform_indices = @transform_2, window_bounds = array<i64: 1, 192>}, {pipeline_mode = #tpu.pipeline_mode<synchronous>, transform_indices = @transform_3, window_bounds = array<i64: 32, 192>}]} {
    %c0 = arith.constant 0 : index
    %c0_0 = arith.constant 0 : index
    %0 = vector.load %arg1[%c0, %c0_0] : memref<32x64xf32, #tpu.memory_space<vmem>>, vector<32x64xf32>
    %c0_1 = arith.constant 0 : index
    %c0_2 = arith.constant 0 : index
    %1 = vector.load %arg2[%c0_1, %c0_2] : memref<64x192xf32, #tpu.memory_space<vmem>>, vector<64x192xf32>
    %cst = arith.constant dense<0.000000e+00> : vector<32x192xf32>
    %2 = tpu.matmul %0, %1, %cst {dimension_numbers = #tpu.dot_dimension_numbers<[1], [0], [0], [1], [0, 0, 1, 1], [], []>} : vector<32x64xf32>, vector<64x192xf32>, vector<32x192xf32> -> vector<32x192xf32>
    %c0_3 = arith.constant 0 : index
    %c0_4 = arith.constant 0 : index
    %3 = vector.load %arg3[%c0_3, %c0_4] : memref<1x192xf32, #tpu.memory_space<vmem>>, vector<1x192xf32>
    %4 = vector.broadcast %3 : vector<1x192xf32> to vector<32x192xf32>
    %5 = arith.addf %2, %4 : vector<32x192xf32>
    %c0_5 = arith.constant 0 : index
    %c0_6 = arith.constant 0 : index
    %6 = vector.load %arg4[%c0_5, %c0_6] : memref<32x192xf32, #tpu.memory_space<vmem>>, vector<32x192xf32>
    tpu.vector_store %arg4[%c0_5, %c0_6], %5 {strides = array<i32>} : memref<32x192xf32, #tpu.memory_space<vmem>>, vector<32x192xf32>,
    return
  }
  func.func @transform_0(%arg0: i32) -> (i32, i32) {
    %c0_i32 = arith.constant 0 : i32
    %c0_i32_0 = arith.constant 0 : i32
    %c0_i32_1 = arith.constant 0 : i32
    return %c0_i32, %c0_i32_0 : i32, i32
  }
  func.func @transform_1(%arg0: i32) -> (i32, i32) {
    %c0_i32 = arith.constant 0 : i32
    %c0_i32_0 = arith.constant 0 : i32
    %c0_i32_1 = arith.constant 0 : i32
    return %c0_i32, %c0_i32_0 : i32, i32
  }
  func.func @transform_2(%arg0: i32) -> (i32, i32) {
    %c0_i32 = arith.constant 0 : i32
    %c0_i32_0 = arith.constant 0 : i32
    %c0_i32_1 = arith.constant 0 : i32
    return %c0_i32, %c0_i32_0 : i32, i32
  }
  func.func @transform_3(%arg0: i32) -> (i32, i32) {
    %c0_i32 = arith.constant 0 : i32
    %c0_i32_0 = arith.constant 0 : i32
    %c0_i32_1 = arith.constant 0 : i32
    return %c0_i32, %c0_i32_0 : i32, i32
  }
}

</mosaic_0001>

<llo_original>
// kernel: _lambda_.4
$region0: #{_lambda_.4}
  #allocation0 [shape = 'u32[]', space=smem, size = 0x4, offset = 0x4, fixed_abs, tag = 'smem constant byte address 0x4 - core index']
  #allocation1 [shape = 'u32[144,128]{1,0:T(1,128)}', space=vmem, size = 0x12000, scoped, tag = 'internal scratch']
  %s0 = inlined_call_operand.hbm [shape: f32[32,16], index: 0, kind: input, shape index: {}]
  %s1 = inlined_call_operand.vmem [shape: f32[16,192], index: 1, kind: input, shape index: {}]
  %s2 = inlined_call_operand.vmem [shape: f32[1,192], index: 2, kind: input, shape index: {}]
  %s3 = inlined_call_operand.vmem [shape: f32[32,192], index: 3, kind: output, shape index: {}]
  %s4 = sld [smem:[#allocation0]]
  $region26: #{_lambda_.4} parent=0
    _
  %s6 = ssub.s32 1, %s4
  %s7 = scalar_select 0, %s6, %s4
  $region1: #{_lambda_.4} parent=0
    #allocation2 [shape = 'u8[16384]{0}', space=vmem, size = 0x4000, scoped, tag = 'input window, operand 0, single buffered']
    #allocation3 [shape = 's32[1]{0}', space=sflag, size = 0x4, scoped, tag = 'scoped memory for _lambda_.4']
    %8 = vsyncpa [#allocation3], 0
    // Predicated region
    $region2: #{_lambda_.4} parent=1 // pred_check
      _
    $region3: #{_lambda_.4} parent=1 // pred_check_branch
      %10 = sbr.rel (0) target = $region5
    $region4: #{_lambda_.4} parent=1 // pred_region
      %s12 = ssub.s32 512, 512
      %13 = vsyncadd [#allocation3], %s12
      %s14 = sshll.u32 [#allocation2], 4
      %s15 = int_to_ptr.vmem [resolvable:$true] %s14
      %20 = dma.hbm_to_vmem [thread:$0]  %s0, 512, %s15, [#allocation3], 128, 128, 8
    $region5: #{_lambda_.4} parent=1 // pred_fallthru
      _
    // Predicated region
    $region6: #{_lambda_.4} parent=1 // pred_check
      _
    $region7: #{_lambda_.4} parent=1 // pred_check_branch
      %22 = sbr.rel (0) target = $region9
    $region8: #{_lambda_.4} parent=1 // pred_region
      _
    $region9: #{_lambda_.4} parent=1 // pred_fallthru
      _
    // Predicated region
    $region10: #{_lambda_.4} parent=1 // pred_check
      _
    $region11: #{_lambda_.4} parent=1 // pred_check_branch
      %24 = sbr.rel (0) target = $region13
    $region12: #{_lambda_.4} parent=1 // pred_region
      _
    $region13: #{_lambda_.4} parent=1 // pred_fallthru
      _
    // Predicated region
    $region14: #{_lambda_.4} parent=1 // pred_check
      _
    $region15: #{_lambda_.4} parent=1 // pred_check_branch
      %26 = sbr.rel (0) target = $region17
    $region16: #{_lambda_.4} parent=1 // pred_region
      %27 = dma.done [#allocation3], 512
    $region17: #{_lambda_.4} parent=1 // pred_fallthru
      _
    %v28 = vld [vmem:[#allocation2] sm:$0xff]
    %v29 = vld [vmem:[#allocation2 + $0x8] sm:$0xff]
    %v30 = vld [vmem:[#allocation2 + $0x10] sm:$0xff]
    %v31 = vld [vmem:[#allocation2 + $0x18] sm:$0xff]
    %v32 = vld [vmem:[%s1] sm:$0xff]
    %v33 = vld [vmem:[%s1 + $0x8] sm:$0xff]
    %v34 = vld [vmem:[%s1 + $0x10] sm:$0xff]
    %v35 = vld [vmem:[%s1 + $0x18] sm:$0xff]
    %v36 = vld [vmem:[%s2] sm:$0x3]
    %v38 = vlaneseq
    %v39 = vshrl.u32 %v38, 7
    %v40 = vsub.s32 0, %v39
    %v41 = vrot.slane %v36, %v40
    %v42 = vlaneseq
    %v43 = vshrl.u32 %v42, 7
    %v44 = vsub.s32 1, %v43
    %v45 = vrot.slane %v36, %v44
    %vm48 = vcmask 130048
    %v50 = vsel %vm48, %v28, 0
    %v53 = vsel %vm48, %v29, 0
    %v56 = vsel %vm48, %v30, 0
    %v59 = vsel %vm48, %v31, 0
    %61 = vmatprep.subr.mxu0 %v33
    %62 = vmatpush1.msra.mxu0 %v32
    %63 = vmatprep.subr.mxu0 %v35
    %64 = vmatpush1.msra.mxu0 %v34
    %65 = vmatprep.subr.mxu0 0.0
    %66 = vmatpush1.msra.mxu0 0.0
    %67 = vmatprep.subr.mxu0 0.0
    %68 = vmatpush1.msra.mxu0 0.0
    %69 = vmatprep.subr.mxu0 0.0
    %70 = vmatpush1.msra.mxu0 0.0
    %71 = vmatprep.subr.mxu0 0.0
    %72 = vmatpush1.msra.mxu0 0.0
    %73 = vmatprep.subr.mxu0 0.0
    %74 = vmatpush1.msra.mxu0 0.0
    %75 = vmatprep.subr.mxu0 0.0
    %76 = vmatpush1.msra.mxu0 0.0
    %77 = vmatprep.subr.mxu0 0.0
    %78 = vmatpush1.msra.mxu0 0.0
    %79 = vmatprep.subr.mxu0 0.0
    %80 = vmatpush1.msra.mxu0 0.0
    %81 = vmatprep.subr.mxu0 0.0
    %82 = vmatpush1.msra.mxu0 0.0
    %83 = vmatprep.subr.mxu0 0.0
    %84 = vmatpush1.msra.mxu0 0.0
    %85 = vmatprep.subr.mxu0 0.0
    %86 = vmatpush1.msra.mxu0 0.0
    %87 = vmatprep.subr.mxu0 0.0
    %88 = vmatpush1.msra.mxu0 0.0
    %89 = vmatprep.subr.mxu0 0.0
    %90 = vmatpush1.msra.mxu0 0.0
    %91 = vmatprep.subr.mxu0 0.0
    %92 = vmatpush1.msra.mxu0 0.0
    %93 = vmatprep.subr.mxu0 0.0
    %94 = vmatpush1.msra.mxu0 0.0
    %95 = vmatprep.subr.mxu0 0.0
    %96 = vmatpush1.msra.mxu0 0.0
    %97 = vmatprep.subr.mxu0 0.0
    %98 = vmatpush1.msra.mxu0 0.0
    %99 = vmatprep.subr.mxu0 0.0
    %100 = vmatpush1.msra.mxu0 0.0
    %101 = vmatprep.subr.mxu0 0.0
    %102 = vmatpush1.msra.mxu0 0.0
    %103 = vmatprep.subr.mxu0 0.0
    %104 = vmatpush1.msra.mxu0 0.0
    %105 = vmatprep.subr.mxu0 0.0
    %106 = vmatpush1.msra.mxu0 0.0
    %107 = vmatprep.subr.mxu0 0.0
    %108 = vmatpush1.msra.mxu0 0.0
    %109 = vmatprep.subr.mxu0 0.0
    %110 = vmatpush1.msra.mxu0 0.0
    %111 = vmatprep.subr.mxu0 0.0
    %112 = vmatpush1.msra.mxu0 0.0
    %113 = vmatprep.subr.mxu0 0.0
    %114 = vmatpush1.msra.mxu0 0.0
    %115 = vmatprep.subr.mxu0 0.0
    %116 = vmatpush1.msra.mxu0 0.0
    %117 = vmatprep.subr.mxu0 0.0
    %118 = vmatpush1.msra.mxu0 0.0
    %119 = vmatprep.subr.mxu0 0.0
    %120 = vmatpush1.msra.mxu0 0.0
    %121 = vmatprep.subr.mxu0 0.0
    %122 = vmatpush1.msra.mxu0 0.0
    %123 = vmatprep.subr.mxu0 0.0
    %124 = vmatpush1.msra.mxu0 0.0
    %125 = vmatprep.mubr.f32.mxu0 0.0
    %126 = vmatmul.mubr.f32.gmra.mrb[0].mxu0 %v50
    %v127 = vpop.f32.mrb[0].mxu0
    %v128 = vadd.f32 %v41, %v127
    %v129 = vpop.f32.mrb[0].mxu0
    %v130 = vadd.f32 %v45, %v129
    %131 = vmatprep.mubr.f32.mxu0 0.0
    %132 = vmatmul.mubr.f32.gmra.mrb[0].mxu0 %v53
    %v133 = vpop.f32.mrb[0].mxu0
    %v134 = vadd.f32 %v41, %v133
    %v135 = vpop.f32.mrb[0].mxu0
    %v136 = vadd.f32 %v45, %v135
    %137 = vmatprep.mubr.f32.mxu0 0.0
    %138 = vmatmul.mubr.f32.gmra.mrb[0].mxu0 %v56
    %v139 = vpop.f32.mrb[0].mxu0
    %v140 = vadd.f32 %v41, %v139
    %v141 = vpop.f32.mrb[0].mxu0
    %v142 = vadd.f32 %v45, %v141
    %143 = vmatprep.mubr.f32.mxu0 0.0
    %144 = vmatmul.mubr.f32.gmra.mrb[0].mxu0 %v59
    %v145 = vpop.f32.mrb[0].mxu0
    %v146 = vadd.f32 %v41, %v145
    %v147 = vpop.f32.mrb[0].mxu0
    %v148 = vadd.f32 %v45, %v147
    %149 = vdwg.mxu0
    %150 = vst [vmem:[%s3] sm:$0xff] %v128
    %vm151 = vcmask 523264
    %152 = vst.msk [vmem:[%s3 + $0x8] sm:$0xff] %vm151, %v130
    %153 = vst [vmem:[%s3 + $0x10] sm:$0xff] %v134
    %154 = vst.msk [vmem:[%s3 + $0x18] sm:$0xff] %vm151, %v136
    %155 = vst [vmem:[%s3 + $0x20] sm:$0xff] %v140
    %156 = vst.msk [vmem:[%s3 + $0x28] sm:$0xff] %vm151, %v142
    %157 = vst [vmem:[%s3 + $0x30] sm:$0xff] %v146
    %158 = vst.msk [vmem:[%s3 + $0x38] sm:$0xff] %vm151, %v148
    // Predicated region
    $region18: #{_lambda_.4} parent=1 // pred_check
      _
    $region19: #{_lambda_.4} parent=1 // pred_check_branch
      %160 = sbr.rel (0) target = $region21
    $region20: #{_lambda_.4} parent=1 // pred_region
      _
    $region21: #{_lambda_.4} parent=1 // pred_fallthru
      _
    // Predicated region
    $region22: #{_lambda_.4} parent=1 // pred_check
      _
    $region23: #{_lambda_.4} parent=1 // pred_check_branch
      %162 = sbr.rel (0) target = $region25
    $region24: #{_lambda_.4} parent=1 // pred_region
      _
    $region25: #{_lambda_.4} parent=1 // pred_fallthru
      _
    %163 = vsyncpa [#allocation3], 1

// kernel: _lambda_.6
$region0: #{_lambda_.6}
  #allocation0 [shape = 'u32[]', space=smem, size = 0x4, offset = 0x4, fixed_abs, tag = 'smem constant byte address 0x4 - core index']
  #allocation1 [shape = 'u32[144,128]{1,0:T(1,128)}', space=vmem, size = 0x12000, scoped, tag = 'internal scratch']
  %s0 = inlined_call_operand.vmem [shape: f32[32,64], index: 0, kind: input, shape index: {}]
  %s1 = inlined_call_operand.vmem [shape: f32[64,192], index: 1, kind: input, shape index: {}]
  %s2 = inlined_call_operand.vmem [shape: f32[1,192], index: 2, kind: input, shape index: {}]
  %s3 = inlined_call_operand.vmem [shape: f32[32,192], index: 3, kind: output, shape index: {}]
  %s4 = sld [smem:[#allocation0]]
  $region22: #{_lambda_.6} parent=0
    _
  %s6 = ssub.s32 1, %s4
  %s7 = scalar_select 0, %s6, %s4
  // Predicated region
  $region2: #{_lambda_.6} parent=0 // pred_check
    _
  $region3: #{_lambda_.6} parent=0 // pred_check_branch
    %9 = sbr.rel (0) target = $region5
  $region4: #{_lambda_.6} parent=0 // pred_region
    _
  $region5: #{_lambda_.6} parent=0 // pred_fallthru
    _
  // Predicated region
  $region6: #{_lambda_.6} parent=0 // pred_check
    _
  $region7: #{_lambda_.6} parent=0 // pred_check_branch
    %11 = sbr.rel (0) target = $region9
  $region8: #{_lambda_.6} parent=0 // pred_region
    _
  $region9: #{_lambda_.6} parent=0 // pred_fallthru
    _
  // Predicated region
  $region10: #{_lambda_.6} parent=0 // pred_check
    _
  $region11: #{_lambda_.6} parent=0 // pred_check_branch
    %13 = sbr.rel (0) target = $region13
  $region12: #{_lambda_.6} parent=0 // pred_region
    _
  $region13: #{_lambda_.6} parent=0 // pred_fallthru
    _
  %v14 = vld [vmem:[%s0] sm:$0xff]
  %v15 = vld [vmem:[%s0 + $0x8] sm:$0xff]
  %v16 = vld [vmem:[%s0 + $0x10] sm:$0xff]
  %v17 = vld [vmem:[%s0 + $0x18] sm:$0xff]
  %v18 = vld [vmem:[%s1] sm:$0xff]
  %v19 = vld [vmem:[%s1 + $0x8] sm:$0xff]
  %v20 = vld [vmem:[%s1 + $0x10] sm:$0xff]
  %v21 = vld [vmem:[%s1 + $0x18] sm:$0xff]
  %v22 = vld [vmem:[%s1 + $0x20] sm:$0xff]
  %v23 = vld [vmem:[%s1 + $0x28] sm:$0xff]
  %v24 = vld [vmem:[%s1 + $0x30] sm:$0xff]
  %v25 = vld [vmem:[%s1 + $0x38] sm:$0xff]
  %v26 = vld [vmem:[%s1 + $0x40] sm:$0xff]
  %v27 = vld [vmem:[%s1 + $0x48] sm:$0xff]
  %v28 = vld [vmem:[%s1 + $0x50] sm:$0xff]
  %v29 = vld [vmem:[%s1 + $0x58] sm:$0xff]
  %v30 = vld [vmem:[%s1 + $0x60] sm:$0xff]
  %v31 = vld [vmem:[%s1 + $0x68] sm:$0xff]
  %v32 = vld [vmem:[%s1 + $0x70] sm:$0xff]
  %v33 = vld [vmem:[%s1 + $0x78] sm:$0xff]
  %v34 = vld [vmem:[%s2] sm:$0x3]
  %v36 = vlaneseq
  %v37 = vshrl.u32 %v36, 7
  %v38 = vsub.s32 0, %v37
  %v39 = vrot.slane %v34, %v38
  %v40 = vlaneseq
  %v41 = vshrl.u32 %v40, 7
  %v42 = vsub.s32 1, %v41
  %v43 = vrot.slane %v34, %v42
  %vm46 = vcmask 523264
  %v48 = vsel %vm46, %v14, 0
  %v51 = vsel %vm46, %v15, 0
  %v54 = vsel %vm46, %v16, 0
  %v57 = vsel %vm46, %v17, 0
  %59 = vmatprep.subr.mxu0 %v19
  %60 = vmatpush1.msra.mxu0 %v18
  %61 = vmatprep.subr.mxu0 %v21
  %62 = vmatpush1.msra.mxu0 %v20
  %63 = vmatprep.subr.mxu0 %v23
  %64 = vmatpush1.msra.mxu0 %v22
  %65 = vmatprep.subr.mxu0 %v25
  %66 = vmatpush1.msra.mxu0 %v24
  %67 = vmatprep.subr.mxu0 %v27
  %68 = vmatpush1.msra.mxu0 %v26
  %69 = vmatprep.subr.mxu0 %v29
  %70 = vmatpush1.msra.mxu0 %v28
  %71 = vmatprep.subr.mxu0 %v31
  %72 = vmatpush1.msra.mxu0 %v30
  %73 = vmatprep.subr.mxu0 %v33
  %74 = vmatpush1.msra.mxu0 %v32
  %75 = vmatprep.subr.mxu0 0.0
  %76 = vmatpush1.msra.mxu0 0.0
  %77 = vmatprep.subr.mxu0 0.0
  %78 = vmatpush1.msra.mxu0 0.0
  %79 = vmatprep.subr.mxu0 0.0
  %80 = vmatpush1.msra.mxu0 0.0
  %81 = vmatprep.subr.mxu0 0.0
  %82 = vmatpush1.msra.mxu0 0.0
  %83 = vmatprep.subr.mxu0 0.0
  %84 = vmatpush1.msra.mxu0 0.0
  %85 = vmatprep.subr.mxu0 0.0
  %86 = vmatpush1.msra.mxu0 0.0
  %87 = vmatprep.subr.mxu0 0.0
  %88 = vmatpush1.msra.mxu0 0.0
  %89 = vmatprep.subr.mxu0 0.0
  %90 = vmatpush1.msra.mxu0 0.0
  %91 = vmatprep.subr.mxu0 0.0
  %92 = vmatpush1.msra.mxu0 0.0
  %93 = vmatprep.subr.mxu0 0.0
  %94 = vmatpush1.msra.mxu0 0.0
  %95 = vmatprep.subr.mxu0 0.0
  %96 = vmatpush1.msra.mxu0 0.0
  %97 = vmatprep.subr.mxu0 0.0
  %98 = vmatpush1.msra.mxu0 0.0
  %99 = vmatprep.subr.mxu0 0.0
  %100 = vmatpush1.msra.mxu0 0.0
  %101 = vmatprep.subr.mxu0 0.0
  %102 = vmatpush1.msra.mxu0 0.0
  %103 = vmatprep.subr.mxu0 0.0
  %104 = vmatpush1.msra.mxu0 0.0
  %105 = vmatprep.subr.mxu0 0.0
  %106 = vmatpush1.msra.mxu0 0.0
  %107 = vmatprep.subr.mxu0 0.0
  %108 = vmatpush1.msra.mxu0 0.0
  %109 = vmatprep.subr.mxu0 0.0
  %110 = vmatpush1.msra.mxu0 0.0
  %111 = vmatprep.subr.mxu0 0.0
  %112 = vmatpush1.msra.mxu0 0.0
  %113 = vmatprep.subr.mxu0 0.0
  %114 = vmatpush1.msra.mxu0 0.0
  %115 = vmatprep.subr.mxu0 0.0
  %116 = vmatpush1.msra.mxu0 0.0
  %117 = vmatprep.subr.mxu0 0.0
  %118 = vmatpush1.msra.mxu0 0.0
  %119 = vmatprep.subr.mxu0 0.0
  %120 = vmatpush1.msra.mxu0 0.0
  %121 = vmatprep.subr.mxu0 0.0
  %122 = vmatpush1.msra.mxu0 0.0
  %123 = vmatprep.mubr.f32.mxu0 0.0
  %124 = vmatmul.mubr.f32.gmra.mrb[0].mxu0 %v48
  %v125 = vpop.f32.mrb[0].mxu0
  %v126 = vadd.f32 %v39, %v125
  %v127 = vpop.f32.mrb[0].mxu0
  %v128 = vadd.f32 %v43, %v127
  %129 = vmatprep.mubr.f32.mxu0 0.0
  %130 = vmatmul.mubr.f32.gmra.mrb[0].mxu0 %v51
  %v131 = vpop.f32.mrb[0].mxu0
  %v132 = vadd.f32 %v39, %v131
  %v133 = vpop.f32.mrb[0].mxu0
  %v134 = vadd.f32 %v43, %v133
  %135 = vmatprep.mubr.f32.mxu0 0.0
  %136 = vmatmul.mubr.f32.gmra.mrb[0].mxu0 %v54
  %v137 = vpop.f32.mrb[0].mxu0
  %v138 = vadd.f32 %v39, %v137
  %v139 = vpop.f32.mrb[0].mxu0
  %v140 = vadd.f32 %v43, %v139
  %141 = vmatprep.mubr.f32.mxu0 0.0
  %142 = vmatmul.mubr.f32.gmra.mrb[0].mxu0 %v57
  %v143 = vpop.f32.mrb[0].mxu0
  %v144 = vadd.f32 %v39, %v143
  %v145 = vpop.f32.mrb[0].mxu0
  %v146 = vadd.f32 %v43, %v145
  %147 = vdwg.mxu0
  %148 = vst [vmem:[%s3] sm:$0xff] %v126
  %149 = vst.msk [vmem:[%s3 + $0x8] sm:$0xff] %vm46, %v128
  %150 = vst [vmem:[%s3 + $0x10] sm:$0xff] %v132
  %151 = vst.msk [vmem:[%s3 + $0x18] sm:$0xff] %vm46, %v134
  %152 = vst [vmem:[%s3 + $0x20] sm:$0xff] %v138
  %153 = vst.msk [vmem:[%s3 + $0x28] sm:$0xff] %vm46, %v140
  %154 = vst [vmem:[%s3 + $0x30] sm:$0xff] %v144
  %155 = vst.msk [vmem:[%s3 + $0x38] sm:$0xff] %vm46, %v146
  // Predicated region
  $region14: #{_lambda_.6} parent=0 // pred_check
    _
  $region15: #{_lambda_.6} parent=0 // pred_check_branch
    %157 = sbr.rel (0) target = $region17
  $region16: #{_lambda_.6} parent=0 // pred_region
    _
  $region17: #{_lambda_.6} parent=0 // pred_fallthru
    _
  // Predicated region
  $region18: #{_lambda_.6} parent=0 // pred_check
    _
  $region19: #{_lambda_.6} parent=0 // pred_check_branch
    %159 = sbr.rel (0) target = $region21
  $region20: #{_lambda_.6} parent=0 // pred_region
    _
  $region21: #{_lambda_.6} parent=0 // pred_fallthru
    _

// kernel: _lambda_.5
$region0: #{_lambda_.5}
  #allocation0 [shape = 'u32[]', space=smem, size = 0x4, offset = 0x4, fixed_abs, tag = 'smem constant byte address 0x4 - core index']
  #allocation1 [shape = 'u32[144,128]{1,0:T(1,128)}', space=vmem, size = 0x12000, scoped, tag = 'internal scratch']
  %s0 = inlined_call_operand.vmem [shape: f32[8,4,32], index: 0, kind: input, shape index: {}]
  %s1 = inlined_call_operand.vmem [shape: f32[8,4,32], index: 1, kind: input, shape index: {}]
  %s2 = inlined_call_operand.vmem [shape: f32[8,4,32], index: 2, kind: input, shape index: {}]
  %s3 = inlined_call_operand.vmem [shape: f32[8,4,32], index: 3, kind: input, shape index: {}]
  %s4 = inlined_call_operand.vmem [shape: f32[8,4,32], index: 4, kind: input, shape index: {}]
  %s5 = inlined_call_operand.vmem [shape: f32[8,4,32], index: 5, kind: input, shape index: {}]
  %s6 = inlined_call_operand.vmem [shape: f32[3,32,32], index: 6, kind: input, shape index: {}]
  %s7 = inlined_call_operand.vmem [shape: f32[3,32,32], index: 7, kind: input, shape index: {}]
  %s8 = inlined_call_operand.vmem [shape: f32[1,32], index: 8, kind: input, shape index: {}]
  %s9 = inlined_call_operand.vmem [shape: f32[1,32], index: 9, kind: input, shape index: {}]
  %s10 = inlined_call_operand.vmem [shape: f32[8,4,64], index: 10, kind: output, shape index: {}]
  %s11 = sld [smem:[#allocation0]]
  $region57: #{_lambda_.5} parent=0
    _
  %s13 = ssub.s32 1, %s11
  %s14 = scalar_select 0, %s13, %s11
  // Predicated region
  $region2: #{_lambda_.5} parent=0 // pred_check
    _
  $region3: #{_lambda_.5} parent=0 // pred_check_branch
    %16 = sbr.rel (0) target = $region5
  $region4: #{_lambda_.5} parent=0 // pred_region
    _
  $region5: #{_lambda_.5} parent=0 // pred_fallthru
    _
  // Predicated region
  $region6: #{_lambda_.5} parent=0 // pred_check
    _
  $region7: #{_lambda_.5} parent=0 // pred_check_branch
    %18 = sbr.rel (0) target = $region9
  $region8: #{_lambda_.5} parent=0 // pred_region
    _
  $region9: #{_lambda_.5} parent=0 // pred_fallthru
    _
  // Predicated region
  $region10: #{_lambda_.5} parent=0 // pred_check
    _
  $region11: #{_lambda_.5} parent=0 // pred_check_branch
    %20 = sbr.rel (0) target = $region13
  $region12: #{_lambda_.5} parent=0 // pred_region
    _
  $region13: #{_lambda_.5} parent=0 // pred_fallthru
    _
  // Predicated region
  $region14: #{_lambda_.5} parent=0 // pred_check
    _
  $region15: #{_lambda_.5} parent=0 // pred_check_branch
    %22 = sbr.rel (0) target = $region17
  $region16: #{_lambda_.5} parent=0 // pred_region
    _
  $region17: #{_lambda_.5} parent=0 // pred_fallthru
    _
  // Predicated region
  $region18: #{_lambda_.5} parent=0 // pred_check
    _
  $region19: #{_lambda_.5} parent=0 // pred_check_branch
    %24 = sbr.rel (0) target = $region21
  $region20: #{_lambda_.5} parent=0 // pred_region
    _
  $region21: #{_lambda_.5} parent=0 // pred_fallthru
    _
  // Predicated region
  $region22: #{_lambda_.5} parent=0 // pred_check
    _
  $region23: #{_lambda_.5} parent=0 // pred_check_branch
    %26 = sbr.rel (0) target = $region25
  $region24: #{_lambda_.5} parent=0 // pred_region
    _
  $region25: #{_lambda_.5} parent=0 // pred_fallthru
    _
  // Predicated region
  $region26: #{_lambda_.5} parent=0 // pred_check
    _
  $region27: #{_lambda_.5} parent=0 // pred_check_branch
    %28 = sbr.rel (0) target = $region29
  $region28: #{_lambda_.5} parent=0 // pred_region
    _
  $region29: #{_lambda_.5} parent=0 // pred_fallthru
    _
  // Predicated region
  $region30: #{_lambda_.5} parent=0 // pred_check
    _
  $region31: #{_lambda_.5} parent=0 // pred_check_branch
    %30 = sbr.rel (0) target = $region33
  $region32: #{_lambda_.5} parent=0 // pred_region
    _
  $region33: #{_lambda_.5} parent=0 // pred_fallthru
    _
  // Predicated region
  $region34: #{_lambda_.5} parent=0 // pred_check
    _
  $region35: #{_lambda_.5} parent=0 // pred_check_branch
    %32 = sbr.rel (0) target = $region37
  $region36: #{_lambda_.5} parent=0 // pred_region
    _
  $region37: #{_lambda_.5} parent=0 // pred_fallthru
    _
  // Predicated region
  $region38: #{_lambda_.5} parent=0 // pred_check
    _
  $region39: #{_lambda_.5} parent=0 // pred_check_branch
    %34 = sbr.rel (0) target = $region41
  $region40: #{_lambda_.5} parent=0 // pred_region
    _
  $region41: #{_lambda_.5} parent=0 // pred_fallthru
    _
  %v35 = vld [vmem:[%s6] sm:$0xff]
  %v36 = vld [vmem:[%s6 + $0x8] sm:$0xff]
  %v37 = vld [vmem:[%s6 + $0x10] sm:$0xff]
  %v38 = vld [vmem:[%s6 + $0x18] sm:$0xff]
  %s39 = scalar_lea.vmem %s6, 32
  %v40 = vld [vmem:[%s39] sm:$0xff]
  %v41 = vld [vmem:[%s39 + $0x8] sm:$0xff]
  %v42 = vld [vmem:[%s39 + $0x10] sm:$0xff]
  %v43 = vld [vmem:[%s39 + $0x18] sm:$0xff]
  %s44 = scalar_lea.vmem %s6, 64
  %v45 = vld [vmem:[%s44] sm:$0xff]
  %v46 = vld [vmem:[%s44 + $0x8] sm:$0xff]
  %v47 = vld [vmem:[%s44 + $0x10] sm:$0xff]
  %v48 = vld [vmem:[%s44 + $0x18] sm:$0xff]
  %v49 = vld [vmem:[%s7] sm:$0xff]
  %v50 = vld [vmem:[%s7 + $0x8] sm:$0xff]
  %v51 = vld [vmem:[%s7 + $0x10] sm:$0xff]
  %v52 = vld [vmem:[%s7 + $0x18] sm:$0xff]
  %s53 = scalar_lea.vmem %s7, 32
  %v54 = vld [vmem:[%s53] sm:$0xff]
  %v55 = vld [vmem:[%s53 + $0x8] sm:$0xff]
  %v56 = vld [vmem:[%s53 + $0x10] sm:$0xff]
  %v57 = vld [vmem:[%s53 + $0x18] sm:$0xff]
  %s58 = scalar_lea.vmem %s7, 64
  %v59 = vld [vmem:[%s58] sm:$0xff]
  %v60 = vld [vmem:[%s58 + $0x8] sm:$0xff]
  %v61 = vld [vmem:[%s58 + $0x10] sm:$0xff]
  %v62 = vld [vmem:[%s58 + $0x18] sm:$0xff]
  %v63 = vld [vmem:[%s8] sm:$0x1]
  %v64 = vld [vmem:[%s9] sm:$0x1]
  loop: start=0, step=1, limit=8
  $region42: #{_lambda_.5} parent=0 // loop_pre_header
    _
  $region43: #{_lambda_.5} parent=0 // loop_header
    %s66 = sphi 0, %s70
    %p67 = scmp.ge.s32.totalorder %s66, 8
    %v71 = vphi 0.0, %v321
    %v72 = vphi 0.0, %v568
  $region44: #{_lambda_.5} parent=0 // loop_header_branch
    %69 = sbr.rel (%p67) target = $region48
  $region45: #{_lambda_.5} parent=0 // loop_body
    %s73 = ssub.s32 7, %s66
    %s74 = smul.u32 %s66, 4
    %s75 = scalar_lea.vmem %s0, %s74
    %v76 = vld [vmem:[%s75] sm:$0xf]
    %s77 = scalar_lea.vmem %s1, %s74
    %v78 = vld [vmem:[%s77] sm:$0xf]
    %s79 = scalar_lea.vmem %s2, %s74
    %v80 = vld [vmem:[%s79] sm:$0xf]
    %vm81 = vcmask 261120
    %v83 = vsel %vm81, %v71, 0
    %85 = vmatprep.subr.mxu0 0.0
    %86 = vmatpush1.msra.mxu0 %v35
    %87 = vmatprep.subr.mxu0 0.0
    %88 = vmatpush1.msra.mxu0 %v36
    %89 = vmatprep.subr.mxu0 0.0
    %90 = vmatpush1.msra.mxu0 %v37
    %91 = vmatprep.subr.mxu0 0.0
    %92 = vmatpush1.msra.mxu0 %v38
    %93 = vmatprep.subr.mxu0 0.0
    %94 = vmatpush1.msra.mxu0 0.0
    %95 = vmatprep.subr.mxu0 0.0
    %96 = vmatpush1.msra.mxu0 0.0
    %97 = vmatprep.subr.mxu0 0.0
    %98 = vmatpush1.msra.mxu0 0.0
    %99 = vmatprep.subr.mxu0 0.0
    %100 = vmatpush1.msra.mxu0 0.0
    %101 = vmatprep.subr.mxu0 0.0
    %102 = vmatpush1.msra.mxu0 0.0
    %103 = vmatprep.subr.mxu0 0.0
    %104 = vmatpush1.msra.mxu0 0.0
    %105 = vmatprep.subr.mxu0 0.0
    %106 = vmatpush1.msra.mxu0 0.0
    %107 = vmatprep.subr.mxu0 0.0
    %108 = vmatpush1.msra.mxu0 0.0
    %109 = vmatprep.subr.mxu0 0.0
    %110 = vmatpush1.msra.mxu0 0.0
    %111 = vmatprep.subr.mxu0 0.0
    %112 = vmatpush1.msra.mxu0 0.0
    %113 = vmatprep.subr.mxu0 0.0
    %114 = vmatpush1.msra.mxu0 0.0
    %115 = vmatprep.subr.mxu0 0.0
    %116 = vmatpush1.msra.mxu0 0.0
    %117 = vmatprep.subr.mxu0 0.0
    %118 = vmatpush1.msra.mxu0 0.0
    %119 = vmatprep.subr.mxu0 0.0
    %120 = vmatpush1.msra.mxu0 0.0
    %121 = vmatprep.subr.mxu0 0.0
    %122 = vmatpush1.msra.mxu0 0.0
    %123 = vmatprep.subr.mxu0 0.0
    %124 = vmatpush1.msra.mxu0 0.0
    %125 = vmatprep.subr.mxu0 0.0
    %126 = vmatpush1.msra.mxu0 0.0
    %127 = vmatprep.subr.mxu0 0.0
    %128 = vmatpush1.msra.mxu0 0.0
    %129 = vmatprep.subr.mxu0 0.0
    %130 = vmatpush1.msra.mxu0 0.0
    %131 = vmatprep.subr.mxu0 0.0
    %132 = vmatpush1.msra.mxu0 0.0
    %133 = vmatprep.subr.mxu0 0.0
    %134 = vmatpush1.msra.mxu0 0.0
    %135 = vmatprep.subr.mxu0 0.0
    %136 = vmatpush1.msra.mxu0 0.0
    %137 = vmatprep.subr.mxu0 0.0
    %138 = vmatpush1.msra.mxu0 0.0
    %139 = vmatprep.subr.mxu0 0.0
    %140 = vmatpush1.msra.mxu0 0.0
    %141 = vmatprep.subr.mxu0 0.0
    %142 = vmatpush1.msra.mxu0 0.0
    %143 = vmatprep.subr.mxu0 0.0
    %144 = vmatpush1.msra.mxu0 0.0
    %145 = vmatprep.subr.mxu0 0.0
    %146 = vmatpush1.msra.mxu0 0.0
    %147 = vmatprep.subr.mxu0 0.0
    %148 = vmatpush1.msra.mxu0 0.0
    %149 = vmatprep.mubr.f32.mxu0 0.0
    %150 = vmatmul.mubr.f32.gmra.mrb[0].mxu0 %v83
    %v151 = vpop.f32.mrb[0].mxu0
    %v152 = vadd.f32 0.0, %v151
    %v153 = vpop.f32.mrb[0].mxu0
    %154 = vdwg.mxu0
    %v155 = vadd.f32 %v76, %v152
    %v156 = vxor.u32 %v155, 2147483648
    %v157 = vmul.f32 %v156, 1.442695
    %v158 = vpow.pop %v157
    %v159 = vadd.f32 %v158, 1.0
    %v160 = vrcp.pop %v159
    %v161 = vmul.f32 1.0, %v160
    %162 = vmatprep.subr.mxu0 0.0
    %163 = vmatpush1.msra.mxu0 %v40
    %164 = vmatprep.subr.mxu0 0.0
    %165 = vmatpush1.msra.mxu0 %v41
    %166 = vmatprep.subr.mxu0 0.0
    %167 = vmatpush1.msra.mxu0 %v42
    %168 = vmatprep.subr.mxu0 0.0
    %169 = vmatpush1.msra.mxu0 %v43
    %170 = vmatprep.subr.mxu0 0.0
    %171 = vmatpush1.msra.mxu0 0.0
    %172 = vmatprep.subr.mxu0 0.0
    %173 = vmatpush1.msra.mxu0 0.0
    %174 = vmatprep.subr.mxu0 0.0
    %175 = vmatpush1.msra.mxu0 0.0
    %176 = vmatprep.subr.mxu0 0.0
    %177 = vmatpush1.msra.mxu0 0.0
    %178 = vmatprep.subr.mxu0 0.0
    %179 = vmatpush1.msra.mxu0 0.0
    %180 = vmatprep.subr.mxu0 0.0
    %181 = vmatpush1.msra.mxu0 0.0
    %182 = vmatprep.subr.mxu0 0.0
    %183 = vmatpush1.msra.mxu0 0.0
    %184 = vmatprep.subr.mxu0 0.0
    %185 = vmatpush1.msra.mxu0 0.0
    %186 = vmatprep.subr.mxu0 0.0
    %187 = vmatpush1.msra.mxu0 0.0
    %188 = vmatprep.subr.mxu0 0.0
    %189 = vmatpush1.msra.mxu0 0.0
    %190 = vmatprep.subr.mxu0 0.0
    %191 = vmatpush1.msra.mxu0 0.0
    %192 = vmatprep.subr.mxu0 0.0
    %193 = vmatpush1.msra.mxu0 0.0
    %194 = vmatprep.subr.mxu0 0.0
    %195 = vmatpush1.msra.mxu0 0.0
    %196 = vmatprep.subr.mxu0 0.0
    %197 = vmatpush1.msra.mxu0 0.0
    %198 = vmatprep.subr.mxu0 0.0
    %199 = vmatpush1.msra.mxu0 0.0
    %200 = vmatprep.subr.mxu0 0.0
    %201 = vmatpush1.msra.mxu0 0.0
    %202 = vmatprep.subr.mxu0 0.0
    %203 = vmatpush1.msra.mxu0 0.0
    %204 = vmatprep.subr.mxu0 0.0
    %205 = vmatpush1.msra.mxu0 0.0
    %206 = vmatprep.subr.mxu0 0.0
    %207 = vmatpush1.msra.mxu0 0.0
    %208 = vmatprep.subr.mxu0 0.0
    %209 = vmatpush1.msra.mxu0 0.0
    %210 = vmatprep.subr.mxu0 0.0
    %211 = vmatpush1.msra.mxu0 0.0
    %212 = vmatprep.subr.mxu0 0.0
    %213 = vmatpush1.msra.mxu0 0.0
    %214 = vmatprep.subr.mxu0 0.0
    %215 = vmatpush1.msra.mxu0 0.0
    %216 = vmatprep.subr.mxu0 0.0
    %217 = vmatpush1.msra.mxu0 0.0
    %218 = vmatprep.subr.mxu0 0.0
    %219 = vmatpush1.msra.mxu0 0.0
    %220 = vmatprep.subr.mxu0 0.0
    %221 = vmatpush1.msra.mxu0 0.0
    %222 = vmatprep.subr.mxu0 0.0
    %223 = vmatpush1.msra.mxu0 0.0
    %224 = vmatprep.subr.mxu0 0.0
    %225 = vmatpush1.msra.mxu0 0.0
    %226 = vmatprep.mubr.f32.mxu0 0.0
    %227 = vmatmul.mubr.f32.gmra.mrb[0].mxu0 %v83
    %v228 = vpop.f32.mrb[0].mxu0
    %v229 = vadd.f32 0.0, %v228
    %v230 = vpop.f32.mrb[0].mxu0
    %231 = vdwg.mxu0
    %v232 = vadd.f32 %v78, %v229
    %v233 = vxor.u32 %v232, 2147483648
    %v234 = vmul.f32 %v233, 1.442695
    %v235 = vpow.pop %v234
    %v236 = vadd.f32 %v235, 1.0
    %v237 = vrcp.pop %v236
    %v238 = vmul.f32 1.0, %v237
    %v240 = vlaneseq
    %v241 = vshrl.u32 %v240, 7
    %v242 = vsub.s32 0, %v241
    %v243 = vrot.slane %v63, %v242
    %245 = vmatprep.subr.mxu0 0.0
    %246 = vmatpush1.msra.mxu0 %v45
    %247 = vmatprep.subr.mxu0 0.0
    %248 = vmatpush1.msra.mxu0 %v46
    %249 = vmatprep.subr.mxu0 0.0
    %250 = vmatpush1.msra.mxu0 %v47
    %251 = vmatprep.subr.mxu0 0.0
    %252 = vmatpush1.msra.mxu0 %v48
    %253 = vmatprep.subr.mxu0 0.0
    %254 = vmatpush1.msra.mxu0 0.0
    %255 = vmatprep.subr.mxu0 0.0
    %256 = vmatpush1.msra.mxu0 0.0
    %257 = vmatprep.subr.mxu0 0.0
    %258 = vmatpush1.msra.mxu0 0.0
    %259 = vmatprep.subr.mxu0 0.0
    %260 = vmatpush1.msra.mxu0 0.0
    %261 = vmatprep.subr.mxu0 0.0
    %262 = vmatpush1.msra.mxu0 0.0
    %263 = vmatprep.subr.mxu0 0.0
    %264 = vmatpush1.msra.mxu0 0.0
    %265 = vmatprep.subr.mxu0 0.0
    %266 = vmatpush1.msra.mxu0 0.0
    %267 = vmatprep.subr.mxu0 0.0
    %268 = vmatpush1.msra.mxu0 0.0
    %269 = vmatprep.subr.mxu0 0.0
    %270 = vmatpush1.msra.mxu0 0.0
    %271 = vmatprep.subr.mxu0 0.0
    %272 = vmatpush1.msra.mxu0 0.0
    %273 = vmatprep.subr.mxu0 0.0
    %274 = vmatpush1.msra.mxu0 0.0
    %275 = vmatprep.subr.mxu0 0.0
    %276 = vmatpush1.msra.mxu0 0.0
    %277 = vmatprep.subr.mxu0 0.0
    %278 = vmatpush1.msra.mxu0 0.0
    %279 = vmatprep.subr.mxu0 0.0
    %280 = vmatpush1.msra.mxu0 0.0
    %281 = vmatprep.subr.mxu0 0.0
    %282 = vmatpush1.msra.mxu0 0.0
    %283 = vmatprep.subr.mxu0 0.0
    %284 = vmatpush1.msra.mxu0 0.0
    %285 = vmatprep.subr.mxu0 0.0
    %286 = vmatpush1.msra.mxu0 0.0
    %287 = vmatprep.subr.mxu0 0.0
    %288 = vmatpush1.msra.mxu0 0.0
    %289 = vmatprep.subr.mxu0 0.0
    %290 = vmatpush1.msra.mxu0 0.0
    %291 = vmatprep.subr.mxu0 0.0
    %292 = vmatpush1.msra.mxu0 0.0
    %293 = vmatprep.subr.mxu0 0.0
    %294 = vmatpush1.msra.mxu0 0.0
    %295 = vmatprep.subr.mxu0 0.0
    %296 = vmatpush1.msra.mxu0 0.0
    %297 = vmatprep.subr.mxu0 0.0
    %298 = vmatpush1.msra.mxu0 0.0
    %299 = vmatprep.subr.mxu0 0.0
    %300 = vmatpush1.msra.mxu0 0.0
    %301 = vmatprep.subr.mxu0 0.0
    %302 = vmatpush1.msra.mxu0 0.0
    %303 = vmatprep.subr.mxu0 0.0
    %304 = vmatpush1.msra.mxu0 0.0
    %305 = vmatprep.subr.mxu0 0.0
    %306 = vmatpush1.msra.mxu0 0.0
    %307 = vmatprep.subr.mxu0 0.0
    %308 = vmatpush1.msra.mxu0 0.0
    %309 = vmatprep.mubr.f32.mxu0 0.0
    %310 = vmatmul.mubr.f32.gmra.mrb[0].mxu0 %v83
    %v311 = vpop.f32.mrb[0].mxu0
    %v312 = vadd.f32 %v243, %v311
    %v313 = vpop.f32.mrb[0].mxu0
    %314 = vdwg.mxu0
    %v315 = vmul.f32 %v161, %v312
    %v316 = vadd.f32 %v80, %v315
    %v317 = vtanh.pop %v316
    %v318 = vsub.f32 1.0, %v238
    %v319 = vmul.f32 %v318, %v317
    %v320 = vmul.f32 %v238, %v71
    %v321 = vadd.f32 %v319, %v320
    %s322 = smul.u32 %s73, 4
    %s323 = scalar_lea.vmem %s3, %s322
    %v324 = vld [vmem:[%s323] sm:$0xf]
    %s325 = scalar_lea.vmem %s4, %s322
    %v326 = vld [vmem:[%s325] sm:$0xf]
    %s327 = scalar_lea.vmem %s5, %s322
    %v328 = vld [vmem:[%s327] sm:$0xf]
    %v330 = vsel %vm81, %v72, 0
    %332 = vmatprep.subr.mxu0 0.0
    %333 = vmatpush1.msra.mxu0 %v49
    %334 = vmatprep.subr.mxu0 0.0
    %335 = vmatpush1.msra.mxu0 %v50
    %336 = vmatprep.subr.mxu0 0.0
    %337 = vmatpush1.msra.mxu0 %v51
    %338 = vmatprep.subr.mxu0 0.0
    %339 = vmatpush1.msra.mxu0 %v52
    %340 = vmatprep.subr.mxu0 0.0
    %341 = vmatpush1.msra.mxu0 0.0
    %342 = vmatprep.subr.mxu0 0.0
    %343 = vmatpush1.msra.mxu0 0.0
    %344 = vmatprep.subr.mxu0 0.0
    %345 = vmatpush1.msra.mxu0 0.0
    %346 = vmatprep.subr.mxu0 0.0
    %347 = vmatpush1.msra.mxu0 0.0
    %348 = vmatprep.subr.mxu0 0.0
    %349 = vmatpush1.msra.mxu0 0.0
    %350 = vmatprep.subr.mxu0 0.0
    %351 = vmatpush1.msra.mxu0 0.0
    %352 = vmatprep.subr.mxu0 0.0
    %353 = vmatpush1.msra.mxu0 0.0
    %354 = vmatprep.subr.mxu0 0.0
    %355 = vmatpush1.msra.mxu0 0.0
    %356 = vmatprep.subr.mxu0 0.0
    %357 = vmatpush1.msra.mxu0 0.0
    %358 = vmatprep.subr.mxu0 0.0
    %359 = vmatpush1.msra.mxu0 0.0
    %360 = vmatprep.subr.mxu0 0.0
    %361 = vmatpush1.msra.mxu0 0.0
    %362 = vmatprep.subr.mxu0 0.0
    %363 = vmatpush1.msra.mxu0 0.0
    %364 = vmatprep.subr.mxu0 0.0
    %365 = vmatpush1.msra.mxu0 0.0
    %366 = vmatprep.subr.mxu0 0.0
    %367 = vmatpush1.msra.mxu0 0.0
    %368 = vmatprep.subr.mxu0 0.0
    %369 = vmatpush1.msra.mxu0 0.0
    %370 = vmatprep.subr.mxu0 0.0
    %371 = vmatpush1.msra.mxu0 0.0
    %372 = vmatprep.subr.mxu0 0.0
    %373 = vmatpush1.msra.mxu0 0.0
    %374 = vmatprep.subr.mxu0 0.0
    %375 = vmatpush1.msra.mxu0 0.0
    %376 = vmatprep.subr.mxu0 0.0
    %377 = vmatpush1.msra.mxu0 0.0
    %378 = vmatprep.subr.mxu0 0.0
    %379 = vmatpush1.msra.mxu0 0.0
    %380 = vmatprep.subr.mxu0 0.0
    %381 = vmatpush1.msra.mxu0 0.0
    %382 = vmatprep.subr.mxu0 0.0
    %383 = vmatpush1.msra.mxu0 0.0
    %384 = vmatprep.subr.mxu0 0.0
    %385 = vmatpush1.msra.mxu0 0.0
    %386 = vmatprep.subr.mxu0 0.0
    %387 = vmatpush1.msra.mxu0 0.0
    %388 = vmatprep.subr.mxu0 0.0
    %389 = vmatpush1.msra.mxu0 0.0
    %390 = vmatprep.subr.mxu0 0.0
    %391 = vmatpush1.msra.mxu0 0.0
    %392 = vmatprep.subr.mxu0 0.0
    %393 = vmatpush1.msra.mxu0 0.0
    %394 = vmatprep.subr.mxu0 0.0
    %395 = vmatpush1.msra.mxu0 0.0
    %396 = vmatprep.mubr.f32.mxu0 0.0
    %397 = vmatmul.mubr.f32.gmra.mrb[0].mxu0 %v330
    %v398 = vpop.f32.mrb[0].mxu0
    %v399 = vadd.f32 0.0, %v398
    %v400 = vpop.f32.mrb[0].mxu0
    %401 = vdwg.mxu0
    %v402 = vadd.f32 %v324, %v399
    %v403 = vxor.u32 %v402, 2147483648
    %v404 = vmul.f32 %v403, 1.442695
    %v405 = vpow.pop %v404
    %v406 = vadd.f32 %v405, 1.0
    %v407 = vrcp.pop %v406
    %v408 = vmul.f32 1.0, %v407
    %409 = vmatprep.subr.mxu0 0.0
    %410 = vmatpush1.msra.mxu0 %v54
    %411 = vmatprep.subr.mxu0 0.0
    %412 = vmatpush1.msra.mxu0 %v55
    %413 = vmatprep.subr.mxu0 0.0
    %414 = vmatpush1.msra.mxu0 %v56
    %415 = vmatprep.subr.mxu0 0.0
    %416 = vmatpush1.msra.mxu0 %v57
    %417 = vmatprep.subr.mxu0 0.0
    %418 = vmatpush1.msra.mxu0 0.0
    %419 = vmatprep.subr.mxu0 0.0
    %420 = vmatpush1.msra.mxu0 0.0
    %421 = vmatprep.subr.mxu0 0.0
    %422 = vmatpush1.msra.mxu0 0.0
    %423 = vmatprep.subr.mxu0 0.0
    %424 = vmatpush1.msra.mxu0 0.0
    %425 = vmatprep.subr.mxu0 0.0
    %426 = vmatpush1.msra.mxu0 0.0
    %427 = vmatprep.subr.mxu0 0.0
    %428 = vmatpush1.msra.mxu0 0.0
    %429 = vmatprep.subr.mxu0 0.0
    %430 = vmatpush1.msra.mxu0 0.0
    %431 = vmatprep.subr.mxu0 0.0
    %432 = vmatpush1.msra.mxu0 0.0
    %433 = vmatprep.subr.mxu0 0.0
    %434 = vmatpush1.msra.mxu0 0.0
    %435 = vmatprep.subr.mxu0 0.0
    %436 = vmatpush1.msra.mxu0 0.0
    %437 = vmatprep.subr.mxu0 0.0
    %438 = vmatpush1.msra.mxu0 0.0
    %439 = vmatprep.subr.mxu0 0.0
    %440 = vmatpush1.msra.mxu0 0.0
    %441 = vmatprep.subr.mxu0 0.0
    %442 = vmatpush1.msra.mxu0 0.0
    %443 = vmatprep.subr.mxu0 0.0
    %444 = vmatpush1.msra.mxu0 0.0
    %445 = vmatprep.subr.mxu0 0.0
    %446 = vmatpush1.msra.mxu0 0.0
    %447 = vmatprep.subr.mxu0 0.0
    %448 = vmatpush1.msra.mxu0 0.0
    %449 = vmatprep.subr.mxu0 0.0
    %450 = vmatpush1.msra.mxu0 0.0
    %451 = vmatprep.subr.mxu0 0.0
    %452 = vmatpush1.msra.mxu0 0.0
    %453 = vmatprep.subr.mxu0 0.0
    %454 = vmatpush1.msra.mxu0 0.0
    %455 = vmatprep.subr.mxu0 0.0
    %456 = vmatpush1.msra.mxu0 0.0
    %457 = vmatprep.subr.mxu0 0.0
    %458 = vmatpush1.msra.mxu0 0.0
    %459 = vmatprep.subr.mxu0 0.0
    %460 = vmatpush1.msra.mxu0 0.0
    %461 = vmatprep.subr.mxu0 0.0
    %462 = vmatpush1.msra.mxu0 0.0
    %463 = vmatprep.subr.mxu0 0.0
    %464 = vmatpush1.msra.mxu0 0.0
    %465 = vmatprep.subr.mxu0 0.0
    %466 = vmatpush1.msra.mxu0 0.0
    %467 = vmatprep.subr.mxu0 0.0
    %468 = vmatpush1.msra.mxu0 0.0
    %469 = vmatprep.subr.mxu0 0.0
    %470 = vmatpush1.msra.mxu0 0.0
    %471 = vmatprep.subr.mxu0 0.0
    %472 = vmatpush1.msra.mxu0 0.0
    %473 = vmatprep.mubr.f32.mxu0 0.0
    %474 = vmatmul.mubr.f32.gmra.mrb[0].mxu0 %v330
    %v475 = vpop.f32.mrb[0].mxu0
    %v476 = vadd.f32 0.0, %v475
    %v477 = vpop.f32.mrb[0].mxu0
    %478 = vdwg.mxu0
    %v479 = vadd.f32 %v326, %v476
    %v480 = vxor.u32 %v479, 2147483648
    %v481 = vmul.f32 %v480, 1.442695
    %v482 = vpow.pop %v481
    %v483 = vadd.f32 %v482, 1.0
    %v484 = vrcp.pop %v483
    %v485 = vmul.f32 1.0, %v484
    %v487 = vlaneseq
    %v488 = vshrl.u32 %v487, 7
    %v489 = vsub.s32 0, %v488
    %v490 = vrot.slane %v64, %v489
    %492 = vmatprep.subr.mxu0 0.0
    %493 = vmatpush1.msra.mxu0 %v59
    %494 = vmatprep.subr.mxu0 0.0
    %495 = vmatpush1.msra.mxu0 %v60
    %496 = vmatprep.subr.mxu0 0.0
    %497 = vmatpush1.msra.mxu0 %v61
    %498 = vmatprep.subr.mxu0 0.0
    %499 = vmatpush1.msra.mxu0 %v62
    %500 = vmatprep.subr.mxu0 0.0
    %501 = vmatpush1.msra.mxu0 0.0
    %502 = vmatprep.subr.mxu0 0.0
    %503 = vmatpush1.msra.mxu0 0.0
    %504 = vmatprep.subr.mxu0 0.0
    %505 = vmatpush1.msra.mxu0 0.0
    %506 = vmatprep.subr.mxu0 0.0
    %507 = vmatpush1.msra.mxu0 0.0
    %508 = vmatprep.subr.mxu0 0.0
    %509 = vmatpush1.msra.mxu0 0.0
    %510 = vmatprep.subr.mxu0 0.0
    %511 = vmatpush1.msra.mxu0 0.0
    %512 = vmatprep.subr.mxu0 0.0
    %513 = vmatpush1.msra.mxu0 0.0
    %514 = vmatprep.subr.mxu0 0.0
    %515 = vmatpush1.msra.mxu0 0.0
    %516 = vmatprep.subr.mxu0 0.0
    %517 = vmatpush1.msra.mxu0 0.0
    %518 = vmatprep.subr.mxu0 0.0
    %519 = vmatpush1.msra.mxu0 0.0
    %520 = vmatprep.subr.mxu0 0.0
    %521 = vmatpush1.msra.mxu0 0.0
    %522 = vmatprep.subr.mxu0 0.0
    %523 = vmatpush1.msra.mxu0 0.0
    %524 = vmatprep.subr.mxu0 0.0
    %525 = vmatpush1.msra.mxu0 0.0
    %526 = vmatprep.subr.mxu0 0.0
    %527 = vmatpush1.msra.mxu0 0.0
    %528 = vmatprep.subr.mxu0 0.0
    %529 = vmatpush1.msra.mxu0 0.0
    %530 = vmatprep.subr.mxu0 0.0
    %531 = vmatpush1.msra.mxu0 0.0
    %532 = vmatprep.subr.mxu0 0.0
    %533 = vmatpush1.msra.mxu0 0.0
    %534 = vmatprep.subr.mxu0 0.0
    %535 = vmatpush1.msra.mxu0 0.0
    %536 = vmatprep.subr.mxu0 0.0
    %537 = vmatpush1.msra.mxu0 0.0
    %538 = vmatprep.subr.mxu0 0.0
    %539 = vmatpush1.msra.mxu0 0.0
    %540 = vmatprep.subr.mxu0 0.0
    %541 = vmatpush1.msra.mxu0 0.0
    %542 = vmatprep.subr.mxu0 0.0
    %543 = vmatpush1.msra.mxu0 0.0
    %544 = vmatprep.subr.mxu0 0.0
    %545 = vmatpush1.msra.mxu0 0.0
    %546 = vmatprep.subr.mxu0 0.0
    %547 = vmatpush1.msra.mxu0 0.0
    %548 = vmatprep.subr.mxu0 0.0
    %549 = vmatpush1.msra.mxu0 0.0
    %550 = vmatprep.subr.mxu0 0.0
    %551 = vmatpush1.msra.mxu0 0.0
    %552 = vmatprep.subr.mxu0 0.0
    %553 = vmatpush1.msra.mxu0 0.0
    %554 = vmatprep.subr.mxu0 0.0
    %555 = vmatpush1.msra.mxu0 0.0
    %556 = vmatprep.mubr.f32.mxu0 0.0
    %557 = vmatmul.mubr.f32.gmra.mrb[0].mxu0 %v330
    %v558 = vpop.f32.mrb[0].mxu0
    %v559 = vadd.f32 %v490, %v558
    %v560 = vpop.f32.mrb[0].mxu0
    %561 = vdwg.mxu0
    %v562 = vmul.f32 %v408, %v559
    %v563 = vadd.f32 %v328, %v562
    %v564 = vtanh.pop %v563
    %v565 = vsub.f32 1.0, %v485
    %v566 = vmul.f32 %v565, %v564
    %v567 = vmul.f32 %v485, %v72
    %v568 = vadd.f32 %v566, %v567
    %s569 = scalar_lea.vmem %s10, %s74
    %vm570 = vcmask 257024
    %571 = vst.msk [vmem:[%s569] sm:$0xf] %vm570, %v321
    %573 = vrot.lane.b32.xlu0 %v568, 32
    %v574 = vpop.permute.xlu0 %573
    %s576 = scalar_lea.vmem %s10, %s322
    %vm577 = vcmask 519424
    %578 = vst.msk [vmem:[%s576] sm:$0xf] %vm577, %v574
  $region46: #{_lambda_.5} parent=0 // loop_footer
    %s70 = sadd.s32 1, %s66
  $region47: #{_lambda_.5} parent=0 // loop_footer_branch
    %65 = sbr.rel target = $region43
  $region48: #{_lambda_.5} parent=0 // loop_exit
    _
  // Predicated region
  $region49: #{_lambda_.5} parent=0 // pred_check
    _
  $region50: #{_lambda_.5} parent=0 // pred_check_branch
    %580 = sbr.rel (0) target = $region52
  $region51: #{_lambda_.5} parent=0 // pred_region
    _
  $region52: #{_lambda_.5} parent=0 // pred_fallthru
    _
  // Predicated region
  $region53: #{_lambda_.5} parent=0 // pred_check
    _
  $region54: #{_lambda_.5} parent=0 // pred_check_branch
    %582 = sbr.rel (0) target = $region56
  $region55: #{_lambda_.5} parent=0 // pred_region
    _
  $region56: #{_lambda_.5} parent=0 // pred_fallthru
    _

</llo_original>
